<compile_context>
chip_gen: v5e
topology: v5e:2x2
jax: 0.10.0
libtpu: 0.0.40
codegen_flags: <defaults>
</compile_context>

<pallas_src>
import jax
import jax.numpy as jnp
from jax.experimental import pallas as pl
from jax.experimental.pallas import tpu as pltpu


IN_DIM, H1, H2, OUT_DIM = 1024, 128, 64, 10


# ----------------------------------------------------------------------------
# Fused kernel: fc1 + ReLU + fc2 + ReLU + fc3 + log_softmax for one batch tile.
# ----------------------------------------------------------------------------
def mlp_fused_kernel(x_ref, w1_ref, b1_ref, w2_ref, b2_ref, w3_ref, b3_ref,
                     o_ref):
    # x_ref: (TB, 1024)  w1: (1024, 128)  w2: (128, 64)  w3: (64, 10)
    h1 = jnp.dot(x_ref[...], w1_ref[...], preferred_element_type=jnp.float32)
    h1 = jnp.maximum(h1 + b1_ref[...], 0.0)                       # ReLU (VPU)

    h2 = jnp.dot(h1, w2_ref[...], preferred_element_type=jnp.float32)
    h2 = jnp.maximum(h2 + b2_ref[...], 0.0)                       # ReLU (VPU)

    logits = jnp.dot(h2, w3_ref[...], preferred_element_type=jnp.float32)
    logits = logits + b3_ref[...]

    # log_softmax(dim=1), max-shifted for stability; exp/log go to the EUP slot.
    m = jnp.max(logits, axis=1, keepdims=True)
    shifted = logits - m
    lse = jnp.log(jnp.sum(jnp.exp(shifted), axis=1, keepdims=True))
    o_ref[...] = shifted - lse


# ----------------------------------------------------------------------------
# Wrapper: batch tiling + single pallas_call.
# ----------------------------------------------------------------------------
def mlp_forward(x, params, *, block_batch=128):
    x2 = x.reshape(-1, IN_DIM).astype(jnp.float32)          # x.view(-1, 1024)
    n = x2.shape[0]

    # Batch tile: up to 128 rows per grid step (sublane-aligned, amortizes the
    # ~0.35us per-step overhead, gives the MXU a decent M dimension).
    tb = min(block_batch, 8 * pl.cdiv(n, 8))
    n_blocks = pl.cdiv(n, tb)
    n_pad = tb * n_blocks
    if n_pad != n:
        x2 = jnp.pad(x2, ((0, n_pad - n), (0, 0)))

    w1, b1 = params["w1"], params["b1"].reshape(1, H1)
    w2, b2 = params["w2"], params["b2"].reshape(1, H2)
    w3, b3 = params["w3"], params["b3"].reshape(1, OUT_DIM)

    out = pl.pallas_call(
        mlp_fused_kernel,
        out_shape=jax.ShapeDtypeStruct((n_pad, OUT_DIM), jnp.float32),
        grid_spec=pltpu.PrefetchScalarGridSpec(
            num_scalar_prefetch=0,
            grid=(n_blocks,),
            in_specs=[
                # Batch-tiled input block.
                pl.BlockSpec((tb, IN_DIM), lambda i: (i, 0)),
                # Weights / biases: constant index_map -> VMEM-resident across
                # the whole grid (fetched once).
                pl.BlockSpec((IN_DIM, H1), lambda i: (0, 0)),
                pl.BlockSpec((1, H1), lambda i: (0, 0)),
                pl.BlockSpec((H1, H2), lambda i: (0, 0)),
                pl.BlockSpec((1, H2), lambda i: (0, 0)),
                pl.BlockSpec((H2, OUT_DIM), lambda i: (0, 0)),
                pl.BlockSpec((1, OUT_DIM), lambda i: (0, 0)),
            ],
            out_specs=pl.BlockSpec((tb, OUT_DIM), lambda i: (i, 0)),
        ),
        compiler_params=pltpu.CompilerParams(
            # Batch-block axis is embarrassingly parallel (v7x: both TCs work).
            dimension_semantics=("parallel",),
            # Sized against v7x's smaller VMEM; per-step footprint here is
            # ~1.5 MiB double-buffered, far under the limit on all generations.
            vmem_limit_bytes=32 * 1024 * 1024,
        ),
    )(x2, w1, b1, w2, b2, w3, b3)

    return out[:n]


# ----------------------------------------------------------------------------
# PyTorch-style nn.Linear init (kaiming-uniform bound 1/sqrt(fan_in)).
# Weights are stored already transposed as (in_features, out_features).
# ----------------------------------------------------------------------------
def init_params(key):
    ks = jax.random.split(key, 6)

    def linear(kw, kb, fan_in, fan_out):
        bound = float(fan_in) ** -0.5
        w = jax.random.uniform(kw, (fan_in, fan_out), jnp.float32, -bound, bound)
        b = jax.random.uniform(kb, (fan_out,), jnp.float32, -bound, bound)
        return w, b

    w1, b1 = linear(ks[0], ks[1], IN_DIM, H1)
    w2, b2 = linear(ks[2], ks[3], H1, H2)
    w3, b3 = linear(ks[4], ks[5], H2, OUT_DIM)
    return {"w1": w1, "b1": b1, "w2": w2, "b2": b2, "w3": w3, "b3": b3}


if __name__ == "__main__":
    key = jax.random.PRNGKey(0)
    k_x, k_p = jax.random.split(key)

    # Batch=2 images of 32x32 = 1024 features (forward does x.view(-1, 1024)).
    x = jax.random.normal(k_x, (2, 1, 32, 32), jnp.float32)
    params = init_params(k_p)

    out = mlp_forward(x, params)
    jax.block_until_ready(out)
    assert out.shape == (2, OUT_DIM)

    # Sanity check against a pure-JAX reference of the same forward pass.
    xf = x.reshape(-1, IN_DIM)
    h1 = jnp.maximum(xf @ params["w1"] + params["b1"], 0.0)
    h2 = jnp.maximum(h1 @ params["w2"] + params["b2"], 0.0)
    ref = jax.nn.log_softmax(h2 @ params["w3"] + params["b3"], axis=1)
    assert bool(jnp.allclose(out, ref, atol=1e-2, rtol=1e-2))

    print("KERNEL_OK")
</pallas_src>

<mosaic_0001>
module attributes {stable_mosaic.version = 11 : i64} {
  func.func @mlp_fused_kernel(%arg0: i32, %arg1: memref<8x1024xf32, #tpu.memory_space<vmem>>, %arg2: memref<1024x128xf32, #tpu.memory_space<vmem>>, %arg3: memref<1x128xf32, #tpu.memory_space<vmem>>, %arg4: memref<128x64xf32, #tpu.memory_space<vmem>>, %arg5: memref<1x64xf32, #tpu.memory_space<vmem>>, %arg6: memref<64x10xf32, #tpu.memory_space<vmem>>, %arg7: memref<1x10xf32, #tpu.memory_space<vmem>>, %arg8: memref<8x10xf32, #tpu.memory_space<vmem>>) attributes {dimension_semantics = [#tpu.dimension_semantics<parallel>], iteration_bounds = array<i64: 1>, scalar_prefetch = 0 : i64, scratch_operands = 0 : i64, tpu.core_type = #tpu.core_type<tc>, window_params = [{transform_indices = @transform_0, window_bounds = array<i64: 8, 1024>}, {pipeline_mode = #tpu.pipeline_mode<synchronous>, transform_indices = @transform_1, window_bounds = array<i64: 1024, 128>}, {pipeline_mode = #tpu.pipeline_mode<synchronous>, transform_indices = @transform_2, window_bounds = array<i64: 1, 128>}, {pipeline_mode = #tpu.pipeline_mode<synchronous>, transform_indices = @transform_3, window_bounds = array<i64: 128, 64>}, {pipeline_mode = #tpu.pipeline_mode<synchronous>, transform_indices = @transform_4, window_bounds = array<i64: 1, 64>}, {pipeline_mode = #tpu.pipeline_mode<synchronous>, transform_indices = @transform_5, window_bounds = array<i64: 64, 10>}, {pipeline_mode = #tpu.pipeline_mode<synchronous>, transform_indices = @transform_6, window_bounds = array<i64: 1, 10>}, {transform_indices = @transform_7, window_bounds = array<i64: 8, 10>}]} {
    %c0 = arith.constant 0 : index
    %c0_0 = arith.constant 0 : index
    %0 = vector.load %arg1[%c0, %c0_0] : memref<8x1024xf32, #tpu.memory_space<vmem>>, vector<8x1024xf32>
    %c0_1 = arith.constant 0 : index
    %c0_2 = arith.constant 0 : index
    %1 = vector.load %arg2[%c0_1, %c0_2] : memref<1024x128xf32, #tpu.memory_space<vmem>>, vector<1024x128xf32>
    %cst = arith.constant dense<0.000000e+00> : vector<8x128xf32>
    %2 = tpu.matmul %0, %1, %cst {dimension_numbers = #tpu.dot_dimension_numbers<[1], [0], [0], [1], [0, 0, 1, 1], [], []>} : vector<8x1024xf32>, vector<1024x128xf32>, vector<8x128xf32> -> vector<8x128xf32>
    %c0_3 = arith.constant 0 : index
    %c0_4 = arith.constant 0 : index
    %3 = vector.load %arg3[%c0_3, %c0_4] : memref<1x128xf32, #tpu.memory_space<vmem>>, vector<1x128xf32>
    %4 = vector.broadcast %3 : vector<1x128xf32> to vector<8x128xf32>
    %5 = arith.addf %2, %4 : vector<8x128xf32>
    %cst_5 = arith.constant 0.000000e+00 : f32
    %6 = vector.broadcast %cst_5 : f32 to vector<8x128xf32>
    %7 = arith.maximumf %5, %6 : vector<8x128xf32>
    %c0_6 = arith.constant 0 : index
    %c0_7 = arith.constant 0 : index
    %8 = vector.load %arg4[%c0_6, %c0_7] : memref<128x64xf32, #tpu.memory_space<vmem>>, vector<128x64xf32>
    %cst_8 = arith.constant dense<0.000000e+00> : vector<8x64xf32>
    %9 = tpu.matmul %7, %8, %cst_8 {dimension_numbers = #tpu.dot_dimension_numbers<[1], [0], [0], [1], [0, 0, 1, 1], [], []>} : vector<8x128xf32>, vector<128x64xf32>, vector<8x64xf32> -> vector<8x64xf32>
    %c0_9 = arith.constant 0 : index
    %c0_10 = arith.constant 0 : index
    %10 = vector.load %arg5[%c0_9, %c0_10] : memref<1x64xf32, #tpu.memory_space<vmem>>, vector<1x64xf32>
    %11 = vector.broadcast %10 : vector<1x64xf32> to vector<8x64xf32>
    %12 = arith.addf %9, %11 : vector<8x64xf32>
    %cst_11 = arith.constant 0.000000e+00 : f32
    %13 = vector.broadcast %cst_11 : f32 to vector<8x64xf32>
    %14 = arith.maximumf %12, %13 : vector<8x64xf32>
    %c0_12 = arith.constant 0 : index
    %c0_13 = arith.constant 0 : index
    %15 = vector.load %arg6[%c0_12, %c0_13] : memref<64x10xf32, #tpu.memory_space<vmem>>, vector<64x10xf32>
    %cst_14 = arith.constant dense<0.000000e+00> : vector<8x10xf32>
    %16 = tpu.matmul %14, %15, %cst_14 {dimension_numbers = #tpu.dot_dimension_numbers<[1], [0], [0], [1], [0, 0, 1, 1], [], []>} : vector<8x64xf32>, vector<64x10xf32>, vector<8x10xf32> -> vector<8x10xf32>
    %c0_15 = arith.constant 0 : index
    %c0_16 = arith.constant 0 : index
    %17 = vector.load %arg7[%c0_15, %c0_16] : memref<1x10xf32, #tpu.memory_space<vmem>>, vector<1x10xf32>
    %18 = vector.broadcast %17 : vector<1x10xf32> to vector<8x10xf32>
    %19 = arith.addf %16, %18 : vector<8x10xf32>
    %cst_17 = arith.constant dense<0xFF800000> : vector<8xf32>
    %20 = vector.multi_reduction <maximumf>, %19, %cst_17 [1] : vector<8x10xf32> to vector<8xf32>
    %21 = vector.shape_cast %20 : vector<8xf32> to vector<8x1xf32>
    %22 = vector.broadcast %21 : vector<8x1xf32> to vector<8x10xf32>
    %23 = arith.subf %19, %22 : vector<8x10xf32>
    %24 = math.exp %23 : vector<8x10xf32>
    %cst_18 = arith.constant dense<0.000000e+00> : vector<8xf32>
    %25 = vector.multi_reduction <add>, %24, %cst_18 [1] : vector<8x10xf32> to vector<8xf32>
    %26 = vector.shape_cast %25 : vector<8xf32> to vector<8x1xf32>
    %27 = math.log %26 : vector<8x1xf32>
    %28 = vector.broadcast %27 : vector<8x1xf32> to vector<8x10xf32>
    %29 = arith.subf %23, %28 : vector<8x10xf32>
    %c0_19 = arith.constant 0 : index
    %c0_20 = arith.constant 0 : index
    %30 = vector.load %arg8[%c0_19, %c0_20] : memref<8x10xf32, #tpu.memory_space<vmem>>, vector<8x10xf32>
    tpu.vector_store %arg8[%c0_19, %c0_20], %29 {strides = array<i32>} : memref<8x10xf32, #tpu.memory_space<vmem>>, vector<8x10xf32>,
    return
  }
  func.func @transform_0(%arg0: i32) -> (i32, i32) {
    %c0_i32 = arith.constant 0 : i32
    %c0_i32_0 = arith.constant 0 : i32
    return %arg0, %c0_i32 : i32, i32
  }
  func.func @transform_1(%arg0: i32) -> (i32, i32) {
    %c0_i32 = arith.constant 0 : i32
    %c0_i32_0 = arith.constant 0 : i32
    %c0_i32_1 = arith.constant 0 : i32
    return %c0_i32, %c0_i32_0 : i32, i32
  }
  func.func @transform_2(%arg0: i32) -> (i32, i32) {
    %c0_i32 = arith.constant 0 : i32
    %c0_i32_0 = arith.constant 0 : i32
    %c0_i32_1 = arith.constant 0 : i32
    return %c0_i32, %c0_i32_0 : i32, i32
  }
  func.func @transform_3(%arg0: i32) -> (i32, i32) {
    %c0_i32 = arith.constant 0 : i32
    %c0_i32_0 = arith.constant 0 : i32
    %c0_i32_1 = arith.constant 0 : i32
    return %c0_i32, %c0_i32_0 : i32, i32
  }
  func.func @transform_4(%arg0: i32) -> (i32, i32) {
    %c0_i32 = arith.constant 0 : i32
    %c0_i32_0 = arith.constant 0 : i32
    %c0_i32_1 = arith.constant 0 : i32
    return %c0_i32, %c0_i32_0 : i32, i32
  }
  func.func @transform_5(%arg0: i32) -> (i32, i32) {
    %c0_i32 = arith.constant 0 : i32
    %c0_i32_0 = arith.constant 0 : i32
    %c0_i32_1 = arith.constant 0 : i32
    return %c0_i32, %c0_i32_0 : i32, i32
  }
  func.func @transform_6(%arg0: i32) -> (i32, i32) {
    %c0_i32 = arith.constant 0 : i32
    %c0_i32_0 = arith.constant 0 : i32
    %c0_i32_1 = arith.constant 0 : i32
    return %c0_i32, %c0_i32_0 : i32, i32
  }
  func.func @transform_7(%arg0: i32) -> (i32, i32) {
    %c0_i32 = arith.constant 0 : i32
    %c0_i32_0 = arith.constant 0 : i32
    return %arg0, %c0_i32 : i32, i32
  }
}

</mosaic_0001>

<llo_original>
// kernel: tpu_custom_call.1
$region0: #{tpu_custom_call.1}
  #allocation0 [shape = 'u32[]', space=smem, size = 0x4, offset = 0x4, fixed_abs, tag = 'smem constant byte address 0x4 - core index']
  #allocation1 [shape = 'u32[72,128]{1,0:T(1,128)}', space=vmem, size = 0x9000, scoped, tag = 'internal scratch']
  %s0 = inlined_call_operand.vmem [shape: f32[8,1024], index: 0, kind: input, shape index: {}]
  %s1 = inlined_call_operand.hbm [shape: f32[1024,128], index: 1, kind: input, shape index: {}]
  %s2 = inlined_call_operand.vmem [shape: f32[1,128], index: 2, kind: input, shape index: {}]
  %s3 = inlined_call_operand.vmem [shape: f32[128,64], index: 3, kind: input, shape index: {}]
  %s4 = inlined_call_operand.vmem [shape: f32[1,64], index: 4, kind: input, shape index: {}]
  %s5 = inlined_call_operand.vmem [shape: f32[64,10], index: 5, kind: input, shape index: {}]
  %s6 = inlined_call_operand.vmem [shape: f32[1,10], index: 6, kind: input, shape index: {}]
  %s7 = inlined_call_operand.hbm [shape: f32[8,10], index: 7, kind: output, shape index: {}]
  %s8 = sld [smem:[#allocation0]]
  $region42: #{tpu_custom_call.1} parent=0
    _
  %s10 = ssub.s32 1, %s8
  %s11 = scalar_select 0, %s10, %s8
  $region1: #{tpu_custom_call.1} parent=0
    #allocation2 [shape = 'u8[524288]{0}', space=vmem, size = 0x80000, scoped, tag = 'input window, operand 1, single buffered']
    #allocation3 [shape = 's32[1]{0}', space=sflag, size = 0x4, scoped, tag = 'scoped memory for tpu_custom_call.1']
    #allocation4 [shape = 's32[1]{0}', space=sflag, size = 0x4, scoped, tag = 'scoped memory for tpu_custom_call.1']
    #allocation5 [shape = 'u8[4096]{0}', space=vmem, size = 0x1000, scoped, tag = 'output window, operand 0, single buffered']
    %12 = vsyncpa [#allocation3], 0
    %13 = vsyncpa [#allocation4], 0
    // Predicated region
    $region2: #{tpu_custom_call.1} parent=1 // pred_check
      _
    $region3: #{tpu_custom_call.1} parent=1 // pred_check_branch
      %15 = sbr.rel (0) target = $region5
    $region4: #{tpu_custom_call.1} parent=1 // pred_region
      _
    $region5: #{tpu_custom_call.1} parent=1 // pred_fallthru
      _
    // Predicated region
    $region6: #{tpu_custom_call.1} parent=1 // pred_check
      _
    $region7: #{tpu_custom_call.1} parent=1 // pred_check_branch
      %17 = sbr.rel (0) target = $region9
    $region8: #{tpu_custom_call.1} parent=1 // pred_region
      %19 = vsyncadd [#allocation3], 0
      %s20 = sshll.u32 %s1, 4
      %s21 = int_to_ptr.hbm [resolvable:$true] %s20
      %s22 = sshll.u32 [#allocation2], 4
      %s23 = int_to_ptr.vmem [resolvable:$true] %s22
      %28 = dma.hbm_to_vmem [thread:$0]  %s21, 16384, %s23, [#allocation3], 128, 128, 8
    $region9: #{tpu_custom_call.1} parent=1 // pred_fallthru
      _
    // Predicated region
    $region10: #{tpu_custom_call.1} parent=1 // pred_check
      _
    $region11: #{tpu_custom_call.1} parent=1 // pred_check_branch
      %30 = sbr.rel (0) target = $region13
    $region12: #{tpu_custom_call.1} parent=1 // pred_region
      _
    $region13: #{tpu_custom_call.1} parent=1 // pred_fallthru
      _
    // Predicated region
    $region14: #{tpu_custom_call.1} parent=1 // pred_check
      _
    $region15: #{tpu_custom_call.1} parent=1 // pred_check_branch
      %32 = sbr.rel (0) target = $region17
    $region16: #{tpu_custom_call.1} parent=1 // pred_region
      _
    $region17: #{tpu_custom_call.1} parent=1 // pred_fallthru
      _
    // Predicated region
    $region18: #{tpu_custom_call.1} parent=1 // pred_check
      _
    $region19: #{tpu_custom_call.1} parent=1 // pred_check_branch
      %34 = sbr.rel (0) target = $region21
    $region20: #{tpu_custom_call.1} parent=1 // pred_region
      _
    $region21: #{tpu_custom_call.1} parent=1 // pred_fallthru
      _
    // Predicated region
    $region22: #{tpu_custom_call.1} parent=1 // pred_check
      _
    $region23: #{tpu_custom_call.1} parent=1 // pred_check_branch
      %36 = sbr.rel (0) target = $region25
    $region24: #{tpu_custom_call.1} parent=1 // pred_region
      _
    $region25: #{tpu_custom_call.1} parent=1 // pred_fallthru
      _
    // Predicated region
    $region26: #{tpu_custom_call.1} parent=1 // pred_check
      _
    $region27: #{tpu_custom_call.1} parent=1 // pred_check_branch
      %38 = sbr.rel (0) target = $region29
    $region28: #{tpu_custom_call.1} parent=1 // pred_region
      _
    $region29: #{tpu_custom_call.1} parent=1 // pred_fallthru
      _
    // Predicated region
    $region30: #{tpu_custom_call.1} parent=1 // pred_check
      _
    $region31: #{tpu_custom_call.1} parent=1 // pred_check_branch
      %40 = sbr.rel (0) target = $region33
    $region32: #{tpu_custom_call.1} parent=1 // pred_region
      %42 = dma.done [#allocation3], 16384
    $region33: #{tpu_custom_call.1} parent=1 // pred_fallthru
      _
    %v43 = vld [vmem:[%s0] sm:$0xff]
    %v44 = vld [vmem:[%s0 + $0x8] sm:$0xff]
    %v45 = vld [vmem:[%s0 + $0x10] sm:$0xff]
    %v46 = vld [vmem:[%s0 + $0x18] sm:$0xff]
    %v47 = vld [vmem:[%s0 + $0x20] sm:$0xff]
    %v48 = vld [vmem:[%s0 + $0x28] sm:$0xff]
    %v49 = vld [vmem:[%s0 + $0x30] sm:$0xff]
    %v50 = vld [vmem:[%s0 + $0x38] sm:$0xff]
    %v51 = vld [vmem:[#allocation2] sm:$0xff]
    %v52 = vld [vmem:[#allocation2 + $0x8] sm:$0xff]
    %v53 = vld [vmem:[#allocation2 + $0x10] sm:$0xff]
    %v54 = vld [vmem:[#allocation2 + $0x18] sm:$0xff]
    %v55 = vld [vmem:[#allocation2 + $0x20] sm:$0xff]
    %v56 = vld [vmem:[#allocation2 + $0x28] sm:$0xff]
    %v57 = vld [vmem:[#allocation2 + $0x30] sm:$0xff]
    %v58 = vld [vmem:[#allocation2 + $0x38] sm:$0xff]
    %v59 = vld [vmem:[#allocation2 + $0x40] sm:$0xff]
    %v60 = vld [vmem:[#allocation2 + $0x48] sm:$0xff]
    %v61 = vld [vmem:[#allocation2 + $0x50] sm:$0xff]
    %v62 = vld [vmem:[#allocation2 + $0x58] sm:$0xff]
    %v63 = vld [vmem:[#allocation2 + $0x60] sm:$0xff]
    %v64 = vld [vmem:[#allocation2 + $0x68] sm:$0xff]
    %v65 = vld [vmem:[#allocation2 + $0x70] sm:$0xff]
    %v66 = vld [vmem:[#allocation2 + $0x78] sm:$0xff]
    %v67 = vld [vmem:[#allocation2 + $0x80] sm:$0xff]
    %v68 = vld [vmem:[#allocation2 + $0x88] sm:$0xff]
    %v69 = vld [vmem:[#allocation2 + $0x90] sm:$0xff]
    %v70 = vld [vmem:[#allocation2 + $0x98] sm:$0xff]
    %v71 = vld [vmem:[#allocation2 + $0xa0] sm:$0xff]
    %v72 = vld [vmem:[#allocation2 + $0xa8] sm:$0xff]
    %v73 = vld [vmem:[#allocation2 + $0xb0] sm:$0xff]
    %v74 = vld [vmem:[#allocation2 + $0xb8] sm:$0xff]
    %v75 = vld [vmem:[#allocation2 + $0xc0] sm:$0xff]
    %v76 = vld [vmem:[#allocation2 + $0xc8] sm:$0xff]
    %v77 = vld [vmem:[#allocation2 + $0xd0] sm:$0xff]
    %v78 = vld [vmem:[#allocation2 + $0xd8] sm:$0xff]
    %v79 = vld [vmem:[#allocation2 + $0xe0] sm:$0xff]
    %v80 = vld [vmem:[#allocation2 + $0xe8] sm:$0xff]
    %v81 = vld [vmem:[#allocation2 + $0xf0] sm:$0xff]
    %v82 = vld [vmem:[#allocation2 + $0xf8] sm:$0xff]
    %v83 = vld [vmem:[#allocation2 + $0x100] sm:$0xff]
    %v84 = vld [vmem:[#allocation2 + $0x108] sm:$0xff]
    %v85 = vld [vmem:[#allocation2 + $0x110] sm:$0xff]
    %v86 = vld [vmem:[#allocation2 + $0x118] sm:$0xff]
    %v87 = vld [vmem:[#allocation2 + $0x120] sm:$0xff]
    %v88 = vld [vmem:[#allocation2 + $0x128] sm:$0xff]
    %v89 = vld [vmem:[#allocation2 + $0x130] sm:$0xff]
    %v90 = vld [vmem:[#allocation2 + $0x138] sm:$0xff]
    %v91 = vld [vmem:[#allocation2 + $0x140] sm:$0xff]
    %v92 = vld [vmem:[#allocation2 + $0x148] sm:$0xff]
    %v93 = vld [vmem:[#allocation2 + $0x150] sm:$0xff]
    %v94 = vld [vmem:[#allocation2 + $0x158] sm:$0xff]
    %v95 = vld [vmem:[#allocation2 + $0x160] sm:$0xff]
    %v96 = vld [vmem:[#allocation2 + $0x168] sm:$0xff]
    %v97 = vld [vmem:[#allocation2 + $0x170] sm:$0xff]
    %v98 = vld [vmem:[#allocation2 + $0x178] sm:$0xff]
    %v99 = vld [vmem:[#allocation2 + $0x180] sm:$0xff]
    %v100 = vld [vmem:[#allocation2 + $0x188] sm:$0xff]
    %v101 = vld [vmem:[#allocation2 + $0x190] sm:$0xff]
    %v102 = vld [vmem:[#allocation2 + $0x198] sm:$0xff]
    %v103 = vld [vmem:[#allocation2 + $0x1a0] sm:$0xff]
    %v104 = vld [vmem:[#allocation2 + $0x1a8] sm:$0xff]
    %v105 = vld [vmem:[#allocation2 + $0x1b0] sm:$0xff]
    %v106 = vld [vmem:[#allocation2 + $0x1b8] sm:$0xff]
    %v107 = vld [vmem:[#allocation2 + $0x1c0] sm:$0xff]
    %v108 = vld [vmem:[#allocation2 + $0x1c8] sm:$0xff]
    %v109 = vld [vmem:[#allocation2 + $0x1d0] sm:$0xff]
    %v110 = vld [vmem:[#allocation2 + $0x1d8] sm:$0xff]
    %v111 = vld [vmem:[#allocation2 + $0x1e0] sm:$0xff]
    %v112 = vld [vmem:[#allocation2 + $0x1e8] sm:$0xff]
    %v113 = vld [vmem:[#allocation2 + $0x1f0] sm:$0xff]
    %v114 = vld [vmem:[#allocation2 + $0x1f8] sm:$0xff]
    %v115 = vld [vmem:[#allocation2 + $0x200] sm:$0xff]
    %v116 = vld [vmem:[#allocation2 + $0x208] sm:$0xff]
    %v117 = vld [vmem:[#allocation2 + $0x210] sm:$0xff]
    %v118 = vld [vmem:[#allocation2 + $0x218] sm:$0xff]
    %v119 = vld [vmem:[#allocation2 + $0x220] sm:$0xff]
    %v120 = vld [vmem:[#allocation2 + $0x228] sm:$0xff]
    %v121 = vld [vmem:[#allocation2 + $0x230] sm:$0xff]
    %v122 = vld [vmem:[#allocation2 + $0x238] sm:$0xff]
    %v123 = vld [vmem:[#allocation2 + $0x240] sm:$0xff]
    %v124 = vld [vmem:[#allocation2 + $0x248] sm:$0xff]
    %v125 = vld [vmem:[#allocation2 + $0x250] sm:$0xff]
    %v126 = vld [vmem:[#allocation2 + $0x258] sm:$0xff]
    %v127 = vld [vmem:[#allocation2 + $0x260] sm:$0xff]
    %v128 = vld [vmem:[#allocation2 + $0x268] sm:$0xff]
    %v129 = vld [vmem:[#allocation2 + $0x270] sm:$0xff]
    %v130 = vld [vmem:[#allocation2 + $0x278] sm:$0xff]
    %v131 = vld [vmem:[#allocation2 + $0x280] sm:$0xff]
    %v132 = vld [vmem:[#allocation2 + $0x288] sm:$0xff]
    %v133 = vld [vmem:[#allocation2 + $0x290] sm:$0xff]
    %v134 = vld [vmem:[#allocation2 + $0x298] sm:$0xff]
    %v135 = vld [vmem:[#allocation2 + $0x2a0] sm:$0xff]
    %v136 = vld [vmem:[#allocation2 + $0x2a8] sm:$0xff]
    %v137 = vld [vmem:[#allocation2 + $0x2b0] sm:$0xff]
    %v138 = vld [vmem:[#allocation2 + $0x2b8] sm:$0xff]
    %v139 = vld [vmem:[#allocation2 + $0x2c0] sm:$0xff]
    %v140 = vld [vmem:[#allocation2 + $0x2c8] sm:$0xff]
    %v141 = vld [vmem:[#allocation2 + $0x2d0] sm:$0xff]
    %v142 = vld [vmem:[#allocation2 + $0x2d8] sm:$0xff]
    %v143 = vld [vmem:[#allocation2 + $0x2e0] sm:$0xff]
    %v144 = vld [vmem:[#allocation2 + $0x2e8] sm:$0xff]
    %v145 = vld [vmem:[#allocation2 + $0x2f0] sm:$0xff]
    %v146 = vld [vmem:[#allocation2 + $0x2f8] sm:$0xff]
    %v147 = vld [vmem:[#allocation2 + $0x300] sm:$0xff]
    %v148 = vld [vmem:[#allocation2 + $0x308] sm:$0xff]
    %v149 = vld [vmem:[#allocation2 + $0x310] sm:$0xff]
    %v150 = vld [vmem:[#allocation2 + $0x318] sm:$0xff]
    %v151 = vld [vmem:[#allocation2 + $0x320] sm:$0xff]
    %v152 = vld [vmem:[#allocation2 + $0x328] sm:$0xff]
    %v153 = vld [vmem:[#allocation2 + $0x330] sm:$0xff]
    %v154 = vld [vmem:[#allocation2 + $0x338] sm:$0xff]
    %v155 = vld [vmem:[#allocation2 + $0x340] sm:$0xff]
    %v156 = vld [vmem:[#allocation2 + $0x348] sm:$0xff]
    %v157 = vld [vmem:[#allocation2 + $0x350] sm:$0xff]
    %v158 = vld [vmem:[#allocation2 + $0x358] sm:$0xff]
    %v159 = vld [vmem:[#allocation2 + $0x360] sm:$0xff]
    %v160 = vld [vmem:[#allocation2 + $0x368] sm:$0xff]
    %v161 = vld [vmem:[#allocation2 + $0x370] sm:$0xff]
    %v162 = vld [vmem:[#allocation2 + $0x378] sm:$0xff]
    %v163 = vld [vmem:[#allocation2 + $0x380] sm:$0xff]
    %v164 = vld [vmem:[#allocation2 + $0x388] sm:$0xff]
    %v165 = vld [vmem:[#allocation2 + $0x390] sm:$0xff]
    %v166 = vld [vmem:[#allocation2 + $0x398] sm:$0xff]
    %v167 = vld [vmem:[#allocation2 + $0x3a0] sm:$0xff]
    %v168 = vld [vmem:[#allocation2 + $0x3a8] sm:$0xff]
    %v169 = vld [vmem:[#allocation2 + $0x3b0] sm:$0xff]
    %v170 = vld [vmem:[#allocation2 + $0x3b8] sm:$0xff]
    %v171 = vld [vmem:[#allocation2 + $0x3c0] sm:$0xff]
    %v172 = vld [vmem:[#allocation2 + $0x3c8] sm:$0xff]
    %v173 = vld [vmem:[#allocation2 + $0x3d0] sm:$0xff]
    %v174 = vld [vmem:[#allocation2 + $0x3d8] sm:$0xff]
    %v175 = vld [vmem:[#allocation2 + $0x3e0] sm:$0xff]
    %v176 = vld [vmem:[#allocation2 + $0x3e8] sm:$0xff]
    %v177 = vld [vmem:[#allocation2 + $0x3f0] sm:$0xff]
    %v178 = vld [vmem:[#allocation2 + $0x3f8] sm:$0xff]
    %v179 = vld [vmem:[%s2] sm:$0x1]
    %v181 = vperm.slane %v179, 0
    %183 = vmatpush.msra.mxu0 %v66
    %184 = vmatpush.msra.mxu0 %v65
    %185 = vmatpush.msra.mxu0 %v64
    %186 = vmatpush.msra.mxu0 %v63
    %187 = vmatpush.msra.mxu0 %v62
    %188 = vmatpush.msra.mxu0 %v61
    %189 = vmatpush.msra.mxu0 %v60
    %190 = vmatpush.msra.mxu0 %v59
    %191 = vmatpush.msra.mxu0 %v58
    %192 = vmatpush.msra.mxu0 %v57
    %193 = vmatpush.msra.mxu0 %v56
    %194 = vmatpush.msra.mxu0 %v55
    %195 = vmatpush.msra.mxu0 %v54
    %196 = vmatpush.msra.mxu0 %v53
    %197 = vmatpush.msra.mxu0 %v52
    %198 = vmatpush.msra.mxu0 %v51
    %199 = vmatmul.f32.gmra.mxu0 %v43
    %v200 = vpop.f32.mrf.mxu0
    %v201 = vadd.f32 %v181, %v200
    %202 = vdwg.mxu0
    %203 = vmatpush.msra.mxu0 %v82
    %204 = vmatpush.msra.mxu0 %v81
    %205 = vmatpush.msra.mxu0 %v80
    %206 = vmatpush.msra.mxu0 %v79
    %207 = vmatpush.msra.mxu0 %v78
    %208 = vmatpush.msra.mxu0 %v77
    %209 = vmatpush.msra.mxu0 %v76
    %210 = vmatpush.msra.mxu0 %v75
    %211 = vmatpush.msra.mxu0 %v74
    %212 = vmatpush.msra.mxu0 %v73
    %213 = vmatpush.msra.mxu0 %v72
    %214 = vmatpush.msra.mxu0 %v71
    %215 = vmatpush.msra.mxu0 %v70
    %216 = vmatpush.msra.mxu0 %v69
    %217 = vmatpush.msra.mxu0 %v68
    %218 = vmatpush.msra.mxu0 %v67
    %219 = vmatmul.f32.gmra.mxu0 %v44
    %v220 = vpop.f32.mrf.mxu0
    %v221 = vadd.f32 %v201, %v220
    %222 = vdwg.mxu0
    %223 = vmatpush.msra.mxu0 %v98
    %224 = vmatpush.msra.mxu0 %v97
    %225 = vmatpush.msra.mxu0 %v96
    %226 = vmatpush.msra.mxu0 %v95
    %227 = vmatpush.msra.mxu0 %v94
    %228 = vmatpush.msra.mxu0 %v93
    %229 = vmatpush.msra.mxu0 %v92
    %230 = vmatpush.msra.mxu0 %v91
    %231 = vmatpush.msra.mxu0 %v90
    %232 = vmatpush.msra.mxu0 %v89
    %233 = vmatpush.msra.mxu0 %v88
    %234 = vmatpush.msra.mxu0 %v87
    %235 = vmatpush.msra.mxu0 %v86
    %236 = vmatpush.msra.mxu0 %v85
    %237 = vmatpush.msra.mxu0 %v84
    %238 = vmatpush.msra.mxu0 %v83
    %239 = vmatmul.f32.gmra.mxu0 %v45
    %v240 = vpop.f32.mrf.mxu0
    %v241 = vadd.f32 %v221, %v240
    %242 = vdwg.mxu0
    %243 = vmatpush.msra.mxu0 %v114
    %244 = vmatpush.msra.mxu0 %v113
    %245 = vmatpush.msra.mxu0 %v112
    %246 = vmatpush.msra.mxu0 %v111
    %247 = vmatpush.msra.mxu0 %v110
    %248 = vmatpush.msra.mxu0 %v109
    %249 = vmatpush.msra.mxu0 %v108
    %250 = vmatpush.msra.mxu0 %v107
    %251 = vmatpush.msra.mxu0 %v106
    %252 = vmatpush.msra.mxu0 %v105
    %253 = vmatpush.msra.mxu0 %v104
    %254 = vmatpush.msra.mxu0 %v103
    %255 = vmatpush.msra.mxu0 %v102
    %256 = vmatpush.msra.mxu0 %v101
    %257 = vmatpush.msra.mxu0 %v100
    %258 = vmatpush.msra.mxu0 %v99
    %259 = vmatmul.f32.gmra.mxu0 %v46
    %v260 = vpop.f32.mrf.mxu0
    %v261 = vadd.f32 %v241, %v260
    %262 = vdwg.mxu0
    %263 = vmatpush.msra.mxu0 %v130
    %264 = vmatpush.msra.mxu0 %v129
    %265 = vmatpush.msra.mxu0 %v128
    %266 = vmatpush.msra.mxu0 %v127
    %267 = vmatpush.msra.mxu0 %v126
    %268 = vmatpush.msra.mxu0 %v125
    %269 = vmatpush.msra.mxu0 %v124
    %270 = vmatpush.msra.mxu0 %v123
    %271 = vmatpush.msra.mxu0 %v122
    %272 = vmatpush.msra.mxu0 %v121
    %273 = vmatpush.msra.mxu0 %v120
    %274 = vmatpush.msra.mxu0 %v119
    %275 = vmatpush.msra.mxu0 %v118
    %276 = vmatpush.msra.mxu0 %v117
    %277 = vmatpush.msra.mxu0 %v116
    %278 = vmatpush.msra.mxu0 %v115
    %279 = vmatmul.f32.gmra.mxu0 %v47
    %v280 = vpop.f32.mrf.mxu0
    %v281 = vadd.f32 %v261, %v280
    %282 = vdwg.mxu0
    %283 = vmatpush.msra.mxu0 %v146
    %284 = vmatpush.msra.mxu0 %v145
    %285 = vmatpush.msra.mxu0 %v144
    %286 = vmatpush.msra.mxu0 %v143
    %287 = vmatpush.msra.mxu0 %v142
    %288 = vmatpush.msra.mxu0 %v141
    %289 = vmatpush.msra.mxu0 %v140
    %290 = vmatpush.msra.mxu0 %v139
    %291 = vmatpush.msra.mxu0 %v138
    %292 = vmatpush.msra.mxu0 %v137
    %293 = vmatpush.msra.mxu0 %v136
    %294 = vmatpush.msra.mxu0 %v135
    %295 = vmatpush.msra.mxu0 %v134
    %296 = vmatpush.msra.mxu0 %v133
    %297 = vmatpush.msra.mxu0 %v132
    %298 = vmatpush.msra.mxu0 %v131
    %299 = vmatmul.f32.gmra.mxu0 %v48
    %v300 = vpop.f32.mrf.mxu0
    %v301 = vadd.f32 %v281, %v300
    %302 = vdwg.mxu0
    %303 = vmatpush.msra.mxu0 %v162
    %304 = vmatpush.msra.mxu0 %v161
    %305 = vmatpush.msra.mxu0 %v160
    %306 = vmatpush.msra.mxu0 %v159
    %307 = vmatpush.msra.mxu0 %v158
    %308 = vmatpush.msra.mxu0 %v157
    %309 = vmatpush.msra.mxu0 %v156
    %310 = vmatpush.msra.mxu0 %v155
    %311 = vmatpush.msra.mxu0 %v154
    %312 = vmatpush.msra.mxu0 %v153
    %313 = vmatpush.msra.mxu0 %v152
    %314 = vmatpush.msra.mxu0 %v151
    %315 = vmatpush.msra.mxu0 %v150
    %316 = vmatpush.msra.mxu0 %v149
    %317 = vmatpush.msra.mxu0 %v148
    %318 = vmatpush.msra.mxu0 %v147
    %319 = vmatmul.f32.gmra.mxu0 %v49
    %v320 = vpop.f32.mrf.mxu0
    %v321 = vadd.f32 %v301, %v320
    %322 = vdwg.mxu0
    %323 = vmatpush.msra.mxu0 %v178
    %324 = vmatpush.msra.mxu0 %v177
    %325 = vmatpush.msra.mxu0 %v176
    %326 = vmatpush.msra.mxu0 %v175
    %327 = vmatpush.msra.mxu0 %v174
    %328 = vmatpush.msra.mxu0 %v173
    %329 = vmatpush.msra.mxu0 %v172
    %330 = vmatpush.msra.mxu0 %v171
    %331 = vmatpush.msra.mxu0 %v170
    %332 = vmatpush.msra.mxu0 %v169
    %333 = vmatpush.msra.mxu0 %v168
    %334 = vmatpush.msra.mxu0 %v167
    %335 = vmatpush.msra.mxu0 %v166
    %336 = vmatpush.msra.mxu0 %v165
    %337 = vmatpush.msra.mxu0 %v164
    %338 = vmatpush.msra.mxu0 %v163
    %339 = vmatmul.f32.gmra.mxu0 %v50
    %v340 = vpop.f32.mrf.mxu0
    %v341 = vadd.f32 %v321, %v340
    %342 = vdwg.mxu0
    %v343 = vmax.f32 %v341, 0.0
    %v344 = vld [vmem:[%s3] sm:$0xff]
    %v345 = vld [vmem:[%s3 + $0x8] sm:$0xff]
    %v346 = vld [vmem:[%s3 + $0x10] sm:$0xff]
    %v347 = vld [vmem:[%s3 + $0x18] sm:$0xff]
    %v348 = vld [vmem:[%s3 + $0x20] sm:$0xff]
    %v349 = vld [vmem:[%s3 + $0x28] sm:$0xff]
    %v350 = vld [vmem:[%s3 + $0x30] sm:$0xff]
    %v351 = vld [vmem:[%s3 + $0x38] sm:$0xff]
    %v352 = vld [vmem:[%s3 + $0x40] sm:$0xff]
    %v353 = vld [vmem:[%s3 + $0x48] sm:$0xff]
    %v354 = vld [vmem:[%s3 + $0x50] sm:$0xff]
    %v355 = vld [vmem:[%s3 + $0x58] sm:$0xff]
    %v356 = vld [vmem:[%s3 + $0x60] sm:$0xff]
    %v357 = vld [vmem:[%s3 + $0x68] sm:$0xff]
    %v358 = vld [vmem:[%s3 + $0x70] sm:$0xff]
    %v359 = vld [vmem:[%s3 + $0x78] sm:$0xff]
    %v360 = vld [vmem:[%s4] sm:$0x1]
    %v362 = vperm.slane %v360, 0
    %364 = vmatpush.msra.mxu0 %v359
    %365 = vmatpush.msra.mxu0 %v358
    %366 = vmatpush.msra.mxu0 %v357
    %367 = vmatpush.msra.mxu0 %v356
    %368 = vmatpush.msra.mxu0 %v355
    %369 = vmatpush.msra.mxu0 %v354
    %370 = vmatpush.msra.mxu0 %v353
    %371 = vmatpush.msra.mxu0 %v352
    %372 = vmatpush.msra.mxu0 %v351
    %373 = vmatpush.msra.mxu0 %v350
    %374 = vmatpush.msra.mxu0 %v349
    %375 = vmatpush.msra.mxu0 %v348
    %376 = vmatpush.msra.mxu0 %v347
    %377 = vmatpush.msra.mxu0 %v346
    %378 = vmatpush.msra.mxu0 %v345
    %379 = vmatpush.msra.mxu0 %v344
    %380 = vmatmul.f32.gmra.mxu0 %v343
    %v381 = vpop.f32.mrf.mxu0
    %v382 = vadd.f32 %v362, %v381
    %383 = vdwg.mxu0
    %v384 = vmax.f32 %v382, 0.0
    %v385 = vld [vmem:[%s5] sm:$0xff]
    %v386 = vld [vmem:[%s5 + $0x8] sm:$0xff]
    %v387 = vld [vmem:[%s5 + $0x10] sm:$0xff]
    %v388 = vld [vmem:[%s5 + $0x18] sm:$0xff]
    %v389 = vld [vmem:[%s5 + $0x20] sm:$0xff]
    %v390 = vld [vmem:[%s5 + $0x28] sm:$0xff]
    %v391 = vld [vmem:[%s5 + $0x30] sm:$0xff]
    %v392 = vld [vmem:[%s5 + $0x38] sm:$0xff]
    %v393 = vld [vmem:[%s6] sm:$0x1]
    %v395 = vperm.slane %v393, 0
    %vm397 = vcmask 523264
    %v399 = vsel %vm397, %v384, 0
    %401 = vmatpush.msra.mxu0 0.0
    %402 = vmatpush.msra.mxu0 0.0
    %403 = vmatpush.msra.mxu0 0.0
    %404 = vmatpush.msra.mxu0 0.0
    %405 = vmatpush.msra.mxu0 0.0
    %406 = vmatpush.msra.mxu0 0.0
    %407 = vmatpush.msra.mxu0 0.0
    %408 = vmatpush.msra.mxu0 0.0
    %409 = vmatpush.msra.mxu0 %v392
    %410 = vmatpush.msra.mxu0 %v391
    %411 = vmatpush.msra.mxu0 %v390
    %412 = vmatpush.msra.mxu0 %v389
    %413 = vmatpush.msra.mxu0 %v388
    %414 = vmatpush.msra.mxu0 %v387
    %415 = vmatpush.msra.mxu0 %v386
    %416 = vmatpush.msra.mxu0 %v385
    %417 = vmatmul.f32.gmra.mxu0 %v399
    %v418 = vpop.f32.mrf.mxu0
    %v419 = vadd.f32 %v395, %v418
    %420 = vdwg.mxu0
    %vm421 = vcmask 80896
    %v422 = vsel %vm421, %v419, -inf
    %423 = vmax.xlane.f32.xlu0 %v422
    %v424 = vpop.xlane.xlu0 %423
    %v425 = vsub.f32 %v419, %v424
    %v426 = vmul.f32 %v425, 1.442695
    %v427 = vpow.pop %v426
    %v428 = vsel %vm421, %v427, 0.0
    %429 = vadd.xlane.f32.xlu0 %v428
    %v430 = vpop.xlane.xlu0 %429
    %v431 = vlog2.pop %v430
    %v432 = vmul.f32 %v431, 0.6931472
    %v433 = vsub.f32 %v425, %v432
    %434 = vst.msk [vmem:[#allocation5] sm:$0xff] %vm421, %v433
    // Predicated region
    $region34: #{tpu_custom_call.1} parent=1 // pred_check
      _
    $region35: #{tpu_custom_call.1} parent=1 // pred_check_branch
      %436 = sbr.rel (0) target = $region37
    $region36: #{tpu_custom_call.1} parent=1 // pred_region
      %438 = vsyncadd [#allocation4], 0
      %s440 = sshll.u32 [#allocation5], 4
      %s441 = int_to_ptr.vmem [resolvable:$true] %s440
      %s442 = sshll.u32 %s7, 4
      %s443 = int_to_ptr.hbm [resolvable:$true] %s442
      %445 = dma.vmem_to_hbm [thread:$0]  %s441, 128, %s443, [#allocation4]
    $region37: #{tpu_custom_call.1} parent=1 // pred_fallthru
      _
    // Predicated region
    $region38: #{tpu_custom_call.1} parent=1 // pred_check
      _
    $region39: #{tpu_custom_call.1} parent=1 // pred_check_branch
      %447 = sbr.rel (0) target = $region41
    $region40: #{tpu_custom_call.1} parent=1 // pred_region
      %449 = dma.done [#allocation4], 128
    $region41: #{tpu_custom_call.1} parent=1 // pred_fallthru
      _
    %450 = vsyncpa [#allocation3], 1
    %451 = vsyncpa [#allocation4], 1

</llo_original>
